<compile_context>
chip_gen: v6e
topology: v6e:2x2x1
jax: 0.10.0
libtpu: 0.0.40
codegen_flags: <defaults>
</compile_context>

<pallas_src>
import jax
import jax.numpy as jnp
from jax.experimental import pallas as pl
from jax.experimental.pallas import tpu as pltpu

HIDDEN = 32
LANES = 128


def _gconvgru_step_kernel(xT_ref, wt_ref, b_ref, wlin_ref, blin_ref, out_ref):
    """One node-tile of: GConvGRU(F, 32, K=1) with H=None -> ReLU -> Linear(32,1).

    Shapes (feature-major, nodes on the lane axis):
      xT_ref:   (F, TILE_N)      transposed node features (streamed)
      wt_ref:   (64, F)          [W_xz ; W_xh]^T    fused gate weights (resident)
      b_ref:    (64, 1)          [b_xz+b_hz ; b_xh+b_hh]
      wlin_ref: (32, 1)          final Linear weight column
      blin_ref: (1, 1)           final Linear bias
      out_ref:  (1, TILE_N)      per-node scalar output, packed on lanes
    """
    # Single fused MXU pass for both surviving gates (z and h~); bias add is a
    # broadcast on the VPU.
    pre = (
        jnp.dot(wt_ref[...], xT_ref[...], preferred_element_type=jnp.float32)
        + b_ref[...]
    )  # (64, TILE_N)

    z = jax.nn.sigmoid(pre[:HIDDEN, :])   # update gate         (EUP)
    h_tilde = jnp.tanh(pre[HIDDEN:, :])   # candidate state     (EUP)
    # H_prev = 0  =>  H_new = Z*0 + (1-Z)*H~  (r-gate and H-side matmuls dead)
    h_relu = jnp.maximum((1.0 - z) * h_tilde, 0.0)          # (32, TILE_N)

    # Linear(32 -> 1) as VPU multiply + cross-sublane reduction (XLU): the
    # store stays lane-dense, no 1-output-lane MXU pass.
    out_ref[...] = (
        jnp.sum(h_relu * wlin_ref[...], axis=0, keepdims=True) + blin_ref[...]
    )


def init_params(node_features, key):
    """Deterministic synthetic parameters carrying the full GConvGRU(F,32,1) +
    Linear(32,1) parameter set (r-gate / H-side weights included for module
    fidelity, even though they are provably dead for one step from H=None)."""
    ks = jax.random.split(key, 14)

    def w(k, fan_in, fan_out):
        return (jax.random.normal(k, (fan_in, fan_out), jnp.float32)
                * (1.0 / jnp.sqrt(fan_in)))

    def b(k, fan_out):
        return jax.random.normal(k, (1, fan_out), jnp.float32) * 0.01

    F, H = node_features, HIDDEN
    return dict(
        wxz=w(ks[0], F, H), bxz=b(ks[1], H), whz=w(ks[2], H, H), bhz=b(ks[3], H),
        wxr=w(ks[4], F, H), bxr=b(ks[5], H), whr=w(ks[6], H, H), bhr=b(ks[7], H),
        wxh=w(ks[8], F, H), bxh=b(ks[9], H), whh=w(ks[10], H, H), bhh=b(ks[11], H),
        wlin=w(ks[12], H, 1), blin=b(ks[13], 1),
    )


def _fold_params(params):
    """Host-side exact folding for the single step from H = 0: fuse the two
    live X-side gate convs into one (F, 64) matrix, fold the H-side biases in,
    and transpose to the feature-major layout used by the kernel."""
    w_fused = jnp.concatenate([params["wxz"], params["wxh"]], axis=1)        # (F, 64)
    b_fused = jnp.concatenate(
        [params["bxz"] + params["bhz"], params["bxh"] + params["bhh"]], axis=1
    )                                                                        # (1, 64)
    return dict(
        wt=w_fused.T.astype(jnp.float32),     # (64, F)
        b=b_fused.T.astype(jnp.float32),      # (64, 1)
        wlin=params["wlin"].astype(jnp.float32),   # (32, 1)
        blin=params["blin"].astype(jnp.float32),   # (1, 1)
    )


def recurrent_gcn_forward(x, edge_index, edge_weight, params, *, tile_n=2048):
    """x: (N, F) float32.  edge_index / edge_weight: unused — K=1 ChebConv has
    no graph-propagation term (see header); accepted for API fidelity."""
    del edge_index, edge_weight
    n, f = x.shape
    folded = _fold_params(params)

    # Lane-align / tile the node dimension; padded columns are zero and are
    # sliced off after the call.
    n_lane = ((n + LANES - 1) // LANES) * LANES
    tile = min(tile_n, n_lane)                       # tile is a multiple of 128
    n_pad = ((n_lane + tile - 1) // tile) * tile
    xT = jnp.pad(x.astype(jnp.float32).T, ((0, 0), (0, n_pad - n)))   # (F, n_pad)

    resident = lambda i: (0, 0)                      # weights stay resident
    out = pl.pallas_call(
        _gconvgru_step_kernel,
        out_shape=jax.ShapeDtypeStruct((1, n_pad), jnp.float32),
        grid=(n_pad // tile,),
        in_specs=[
            pl.BlockSpec((f, tile), lambda i: (0, i)),        # X^T, streamed
            pl.BlockSpec((2 * HIDDEN, f), resident),          # fused gate W^T
            pl.BlockSpec((2 * HIDDEN, 1), resident),          # fused gate bias
            pl.BlockSpec((HIDDEN, 1), resident),              # Linear weight
            pl.BlockSpec((1, 1), resident),                   # Linear bias
        ],
        out_specs=pl.BlockSpec((1, tile), lambda i: (0, i)),
        compiler_params=pltpu.CompilerParams(
            dimension_semantics=("parallel",),                # v7x: shard over 2 TCs
        ),
    )(xT, folded["wt"], folded["b"], folded["wlin"], folded["blin"])
    return out[0, :n].reshape(n, 1)


def _reference_forward(x, params):
    """Pure-JAX reference of the full original module math (H=None -> zeros)."""
    h = jnp.zeros((x.shape[0], HIDDEN), jnp.float32)
    z = jax.nn.sigmoid(x @ params["wxz"] + params["bxz"]
                       + h @ params["whz"] + params["bhz"])
    r = jax.nn.sigmoid(x @ params["wxr"] + params["bxr"]
                       + h @ params["whr"] + params["bhr"])
    h_tilde = jnp.tanh(x @ params["wxh"] + params["bxh"]
                       + (h * r) @ params["whh"] + params["bhh"])
    h_new = z * h + (1.0 - z) * h_tilde
    return jnp.maximum(h_new, 0.0) @ params["wlin"] + params["blin"]


if __name__ == "__main__":
    key = jax.random.PRNGKey(0)
    k_param, k_x, k_ei, k_ew = jax.random.split(key, 4)

    num_nodes = 128
    node_features = 4
    num_edges = 256

    x = jax.random.normal(k_x, (num_nodes, node_features), jnp.float32)
    edge_index = jax.random.randint(k_ei, (2, num_edges), 0, num_nodes, jnp.int32)
    edge_weight = jax.random.uniform(k_ew, (num_edges,), jnp.float32)

    params = init_params(node_features, k_param)

    out = recurrent_gcn_forward(x, edge_index, edge_weight, params)
    out = jax.block_until_ready(out)
    assert out.shape == (num_nodes, 1) and out.dtype == jnp.float32

    ref = _reference_forward(x, params)
    assert jnp.allclose(out, ref, rtol=1e-3, atol=1e-3), \
        float(jnp.max(jnp.abs(out - ref)))
    print("KERNEL_OK")
</pallas_src>

<mosaic_0001>
module attributes {stable_mosaic.version = 11 : i64} {
  func.func @_gconvgru_step_kernel(%arg0: i32, %arg1: memref<4x128xf32, #tpu.memory_space<vmem>>, %arg2: memref<64x4xf32, #tpu.memory_space<vmem>>, %arg3: memref<64x1xf32, #tpu.memory_space<vmem>>, %arg4: memref<32x1xf32, #tpu.memory_space<vmem>>, %arg5: memref<1x1xf32, #tpu.memory_space<vmem>>, %arg6: memref<1x128xf32, #tpu.memory_space<vmem>>) attributes {dimension_semantics = [#tpu.dimension_semantics<parallel>], iteration_bounds = array<i64: 1>, scalar_prefetch = 0 : i64, scratch_operands = 0 : i64, tpu.core_type = #tpu.core_type<tc>, window_params = [{transform_indices = @transform_0, window_bounds = array<i64: 4, 128>}, {pipeline_mode = #tpu.pipeline_mode<synchronous>, transform_indices = @transform_1, window_bounds = array<i64: 64, 4>}, {pipeline_mode = #tpu.pipeline_mode<synchronous>, transform_indices = @transform_2, window_bounds = array<i64: 64, 1>}, {pipeline_mode = #tpu.pipeline_mode<synchronous>, transform_indices = @transform_3, window_bounds = array<i64: 32, 1>}, {pipeline_mode = #tpu.pipeline_mode<synchronous>, transform_indices = @transform_4, window_bounds = array<i64: 1, 1>}, {transform_indices = @transform_5, window_bounds = array<i64: 1, 128>}]} {
    %c0 = arith.constant 0 : index
    %c0_0 = arith.constant 0 : index
    %0 = vector.load %arg2[%c0, %c0_0] : memref<64x4xf32, #tpu.memory_space<vmem>>, vector<64x4xf32>
    %c0_1 = arith.constant 0 : index
    %c0_2 = arith.constant 0 : index
    %1 = vector.load %arg1[%c0_1, %c0_2] : memref<4x128xf32, #tpu.memory_space<vmem>>, vector<4x128xf32>
    %cst = arith.constant dense<0.000000e+00> : vector<64x128xf32>
    %2 = tpu.matmul %0, %1, %cst {dimension_numbers = #tpu.dot_dimension_numbers<[1], [0], [0], [1], [0, 0, 1, 1], [], []>} : vector<64x4xf32>, vector<4x128xf32>, vector<64x128xf32> -> vector<64x128xf32>
    %c0_3 = arith.constant 0 : index
    %c0_4 = arith.constant 0 : index
    %3 = vector.load %arg3[%c0_3, %c0_4] : memref<64x1xf32, #tpu.memory_space<vmem>>, vector<64x1xf32>
    %4 = vector.broadcast %3 : vector<64x1xf32> to vector<64x128xf32>
    %5 = arith.addf %2, %4 : vector<64x128xf32>
    %6 = vector.extract_strided_slice %5 {offsets = [0, 0], sizes = [32, 128], strides = [1, 1]} : vector<64x128xf32> to vector<32x128xf32>
    %7 = arith.negf %6 : vector<32x128xf32>
    %8 = math.exp %7 : vector<32x128xf32>
    %cst_5 = arith.constant 1.000000e+00 : f32
    %9 = vector.broadcast %cst_5 : f32 to vector<32x128xf32>
    %10 = arith.addf %9, %8 : vector<32x128xf32>
    %11 = arith.divf %9, %10 : vector<32x128xf32>
    %12 = vector.extract_strided_slice %5 {offsets = [32, 0], sizes = [32, 128], strides = [1, 1]} : vector<64x128xf32> to vector<32x128xf32>
    %13 = math.tanh %12 : vector<32x128xf32>
    %cst_6 = arith.constant 1.000000e+00 : f32
    %14 = vector.broadcast %cst_6 : f32 to vector<32x128xf32>
    %15 = arith.subf %14, %11 : vector<32x128xf32>
    %16 = arith.mulf %15, %13 : vector<32x128xf32>
    %cst_7 = arith.constant 0.000000e+00 : f32
    %17 = vector.broadcast %cst_7 : f32 to vector<32x128xf32>
    %18 = arith.maximumf %16, %17 : vector<32x128xf32>
    %c0_8 = arith.constant 0 : index
    %c0_9 = arith.constant 0 : index
    %19 = vector.load %arg4[%c0_8, %c0_9] : memref<32x1xf32, #tpu.memory_space<vmem>>, vector<32x1xf32>
    %20 = vector.broadcast %19 : vector<32x1xf32> to vector<32x128xf32>
    %21 = arith.mulf %18, %20 : vector<32x128xf32>
    %cst_10 = arith.constant dense<0.000000e+00> : vector<128xf32>
    %22 = vector.multi_reduction <add>, %21, %cst_10 [0] : vector<32x128xf32> to vector<128xf32>
    %23 = vector.shape_cast %22 : vector<128xf32> to vector<1x128xf32>
    %c0_11 = arith.constant 0 : index
    %c0_12 = arith.constant 0 : index
    %24 = vector.load %arg5[%c0_11, %c0_12] : memref<1x1xf32, #tpu.memory_space<vmem>>, vector<1x1xf32>
    %25 = vector.broadcast %24 : vector<1x1xf32> to vector<1x128xf32>
    %26 = arith.addf %23, %25 : vector<1x128xf32>
    %c0_13 = arith.constant 0 : index
    %c0_14 = arith.constant 0 : index
    %27 = vector.load %arg6[%c0_13, %c0_14] : memref<1x128xf32, #tpu.memory_space<vmem>>, vector<1x128xf32>
    tpu.vector_store %arg6[%c0_13, %c0_14], %26 {strides = array<i32>} : memref<1x128xf32, #tpu.memory_space<vmem>>, vector<1x128xf32>,
    return
  }
  func.func @transform_0(%arg0: i32) -> (i32, i32) {
    %c0_i32 = arith.constant 0 : i32
    %c0_i32_0 = arith.constant 0 : i32
    return %c0_i32, %arg0 : i32, i32
  }
  func.func @transform_1(%arg0: i32) -> (i32, i32) {
    %c0_i32 = arith.constant 0 : i32
    %c0_i32_0 = arith.constant 0 : i32
    %c0_i32_1 = arith.constant 0 : i32
    return %c0_i32, %c0_i32_0 : i32, i32
  }
  func.func @transform_2(%arg0: i32) -> (i32, i32) {
    %c0_i32 = arith.constant 0 : i32
    %c0_i32_0 = arith.constant 0 : i32
    %c0_i32_1 = arith.constant 0 : i32
    return %c0_i32, %c0_i32_0 : i32, i32
  }
  func.func @transform_3(%arg0: i32) -> (i32, i32) {
    %c0_i32 = arith.constant 0 : i32
    %c0_i32_0 = arith.constant 0 : i32
    %c0_i32_1 = arith.constant 0 : i32
    return %c0_i32, %c0_i32_0 : i32, i32
  }
  func.func @transform_4(%arg0: i32) -> (i32, i32) {
    %c0_i32 = arith.constant 0 : i32
    %c0_i32_0 = arith.constant 0 : i32
    %c0_i32_1 = arith.constant 0 : i32
    return %c0_i32, %c0_i32_0 : i32, i32
  }
  func.func @transform_5(%arg0: i32) -> (i32, i32) {
    %c0_i32 = arith.constant 0 : i32
    %c0_i32_0 = arith.constant 0 : i32
    return %c0_i32, %arg0 : i32, i32
  }
}

</mosaic_0001>

<llo_original>
// kernel: tpu_custom_call.1
$region0: #{tpu_custom_call.1}
  #allocation0 [shape = 'u32[]', space=smem, size = 0x4, offset = 0x4, fixed_abs, tag = 'smem constant byte address 0x4 - core index']
  #allocation1 [shape = 'u32[144,128]{1,0:T(1,128)}', space=vmem, size = 0x12000, scoped, tag = 'internal scratch']
  #allocation2 [shape = 'f32[1,1]{1,0:T(1,128)S(1)}', space=vmem, size = 0x200, scoped, tag = 'scoped memory for tpu_custom_call.1']
  %s0 = inlined_call_operand.vmem [shape: f32[4,128], index: 0, kind: input, shape index: {}]
  %s1 = inlined_call_operand.vmem [shape: f32[64,4], index: 1, kind: input, shape index: {}]
  %s2 = inlined_call_operand.vmem [shape: f32[64,1], index: 2, kind: input, shape index: {}]
  %s3 = inlined_call_operand.vmem [shape: f32[32,1], index: 3, kind: input, shape index: {}]
  %s4 = inlined_call_operand.<no memory space> [shape: f32[1,1], index: 4, kind: input, shape index: {}]
  %s5 = inlined_call_operand.hbm [shape: f32[1,128], index: 5, kind: output, shape index: {}]
  %s6 = sld [smem:[#allocation0]]
  $region30: #{tpu_custom_call.1} parent=0
    _
  %s8 = ssub.s32 1, %s6
  %s9 = scalar_select 0, %s8, %s6
  %v10 = vstv %s4
  %11 = vst [vmem:[#allocation2] sm:$0x1] %v10
  $region1: #{tpu_custom_call.1} parent=0
    #allocation3 [shape = 'u8[512]{0}', space=vmem, size = 0x400, scoped, tag = 'output window, operand 0, single buffered']
    #allocation4 [shape = 's32[1]{0}', space=sflag, size = 0x4, scoped, tag = 'scoped memory for tpu_custom_call.1']
    %12 = vsyncpa [#allocation4], 0
    // Predicated region
    $region2: #{tpu_custom_call.1} parent=1 // pred_check
      _
    $region3: #{tpu_custom_call.1} parent=1 // pred_check_branch
      %14 = sbr.rel (0) target = $region5
    $region4: #{tpu_custom_call.1} parent=1 // pred_region
      _
    $region5: #{tpu_custom_call.1} parent=1 // pred_fallthru
      _
    // Predicated region
    $region6: #{tpu_custom_call.1} parent=1 // pred_check
      _
    $region7: #{tpu_custom_call.1} parent=1 // pred_check_branch
      %16 = sbr.rel (0) target = $region9
    $region8: #{tpu_custom_call.1} parent=1 // pred_region
      _
    $region9: #{tpu_custom_call.1} parent=1 // pred_fallthru
      _
    // Predicated region
    $region10: #{tpu_custom_call.1} parent=1 // pred_check
      _
    $region11: #{tpu_custom_call.1} parent=1 // pred_check_branch
      %18 = sbr.rel (0) target = $region13
    $region12: #{tpu_custom_call.1} parent=1 // pred_region
      _
    $region13: #{tpu_custom_call.1} parent=1 // pred_fallthru
      _
    // Predicated region
    $region14: #{tpu_custom_call.1} parent=1 // pred_check
      _
    $region15: #{tpu_custom_call.1} parent=1 // pred_check_branch
      %20 = sbr.rel (0) target = $region17
    $region16: #{tpu_custom_call.1} parent=1 // pred_region
      _
    $region17: #{tpu_custom_call.1} parent=1 // pred_fallthru
      _
    // Predicated region
    $region18: #{tpu_custom_call.1} parent=1 // pred_check
      _
    $region19: #{tpu_custom_call.1} parent=1 // pred_check_branch
      %22 = sbr.rel (0) target = $region21
    $region20: #{tpu_custom_call.1} parent=1 // pred_region
      _
    $region21: #{tpu_custom_call.1} parent=1 // pred_fallthru
      _
    %v23 = vld [vmem:[%s1] sm:$0xff]
    %v24 = vld [vmem:[%s1 + $0x8] sm:$0xff]
    %v25 = vld [vmem:[%s1 + $0x10] sm:$0xff]
    %v26 = vld [vmem:[%s1 + $0x18] sm:$0xff]
    %v27 = vld [vmem:[%s1 + $0x20] sm:$0xff]
    %v28 = vld [vmem:[%s1 + $0x28] sm:$0xff]
    %v29 = vld [vmem:[%s1 + $0x30] sm:$0xff]
    %v30 = vld [vmem:[%s1 + $0x38] sm:$0xff]
    %v31 = vld [vmem:[%s0] sm:$0xf]
    %v32 = vld [vmem:[%s2] sm:$0xff]
    %v33 = vld [vmem:[%s2 + $0x8] sm:$0xff]
    %v34 = vld [vmem:[%s2 + $0x10] sm:$0xff]
    %v35 = vld [vmem:[%s2 + $0x18] sm:$0xff]
    %v36 = vld [vmem:[%s2 + $0x20] sm:$0xff]
    %v37 = vld [vmem:[%s2 + $0x28] sm:$0xff]
    %v38 = vld [vmem:[%s2 + $0x30] sm:$0xff]
    %v39 = vld [vmem:[%s2 + $0x38] sm:$0xff]
    %41 = vset.pattern.permute.xlu0 0
    %42 = vperm.xlu0 %41, %v32
    %v43 = vpop.permute.xlu0 %42
    %46 = vset.pattern.permute.xlu0 0
    %47 = vperm.xlu0 %46, %v33
    %v48 = vpop.permute.xlu0 %47
    %51 = vset.pattern.permute.xlu0 0
    %52 = vperm.xlu0 %51, %v34
    %v53 = vpop.permute.xlu0 %52
    %56 = vset.pattern.permute.xlu0 0
    %57 = vperm.xlu0 %56, %v35
    %v58 = vpop.permute.xlu0 %57
    %61 = vset.pattern.permute.xlu0 0
    %62 = vperm.xlu0 %61, %v36
    %v63 = vpop.permute.xlu0 %62
    %66 = vset.pattern.permute.xlu0 0
    %67 = vperm.xlu0 %66, %v37
    %v68 = vpop.permute.xlu0 %67
    %71 = vset.pattern.permute.xlu0 0
    %72 = vperm.xlu0 %71, %v38
    %v73 = vpop.permute.xlu0 %72
    %76 = vset.pattern.permute.xlu0 0
    %77 = vperm.xlu0 %76, %v39
    %v78 = vpop.permute.xlu0 %77
    %vm80 = vcmask 31744
    %v82 = vsel %vm80, %v23, 0
    %v85 = vsel %vm80, %v24, 0
    %v88 = vsel %vm80, %v25, 0
    %v91 = vsel %vm80, %v26, 0
    %v94 = vsel %vm80, %v27, 0
    %v97 = vsel %vm80, %v28, 0
    %v100 = vsel %vm80, %v29, 0
    %v103 = vsel %vm80, %v30, 0
    %vm105 = vcmask 1043456
    %v107 = vsel %vm105, %v31, 0
    %109 = vmatprep.subr.mxu0 0.0
    %110 = vmatpush1.msra.mxu0 0.0
    %111 = vmatprep.subr.mxu0 0.0
    %112 = vmatpush1.msra.mxu0 0.0
    %113 = vmatprep.subr.mxu0 0.0
    %114 = vmatpush1.msra.mxu0 0.0
    %115 = vmatprep.subr.mxu0 0.0
    %116 = vmatpush1.msra.mxu0 0.0
    %117 = vmatprep.subr.mxu0 0.0
    %118 = vmatpush1.msra.mxu0 0.0
    %119 = vmatprep.subr.mxu0 0.0
    %120 = vmatpush1.msra.mxu0 0.0
    %121 = vmatprep.subr.mxu0 0.0
    %122 = vmatpush1.msra.mxu0 0.0
    %123 = vmatprep.subr.mxu0 0.0
    %124 = vmatpush1.msra.mxu0 0.0
    %125 = vmatprep.subr.mxu0 0.0
    %126 = vmatpush1.msra.mxu0 0.0
    %127 = vmatprep.subr.mxu0 0.0
    %128 = vmatpush1.msra.mxu0 0.0
    %129 = vmatprep.subr.mxu0 0.0
    %130 = vmatpush1.msra.mxu0 0.0
    %131 = vmatprep.subr.mxu0 0.0
    %132 = vmatpush1.msra.mxu0 0.0
    %133 = vmatprep.subr.mxu0 0.0
    %134 = vmatpush1.msra.mxu0 0.0
    %135 = vmatprep.subr.mxu0 0.0
    %136 = vmatpush1.msra.mxu0 0.0
    %137 = vmatprep.subr.mxu0 0.0
    %138 = vmatpush1.msra.mxu0 0.0
    %139 = vmatprep.subr.mxu0 0.0
    %140 = vmatpush1.msra.mxu0 %v107
    %141 = vmatprep.subr.mxu0 0.0
    %142 = vmatpush2.msra.mxu0 0.0
    %143 = vmatprep.subr.mxu0 0.0
    %144 = vmatpush2.msra.mxu0 0.0
    %145 = vmatprep.subr.mxu0 0.0
    %146 = vmatpush2.msra.mxu0 0.0
    %147 = vmatprep.subr.mxu0 0.0
    %148 = vmatpush2.msra.mxu0 0.0
    %149 = vmatprep.subr.mxu0 0.0
    %150 = vmatpush2.msra.mxu0 0.0
    %151 = vmatprep.subr.mxu0 0.0
    %152 = vmatpush2.msra.mxu0 0.0
    %153 = vmatprep.subr.mxu0 0.0
    %154 = vmatpush2.msra.mxu0 0.0
    %155 = vmatprep.subr.mxu0 0.0
    %156 = vmatpush2.msra.mxu0 0.0
    %157 = vmatprep.subr.mxu0 0.0
    %158 = vmatpush2.msra.mxu0 0.0
    %159 = vmatprep.subr.mxu0 0.0
    %160 = vmatpush2.msra.mxu0 0.0
    %161 = vmatprep.subr.mxu0 0.0
    %162 = vmatpush2.msra.mxu0 0.0
    %163 = vmatprep.subr.mxu0 0.0
    %164 = vmatpush2.msra.mxu0 0.0
    %165 = vmatprep.subr.mxu0 0.0
    %166 = vmatpush2.msra.mxu0 0.0
    %167 = vmatprep.subr.mxu0 0.0
    %168 = vmatpush2.msra.mxu0 0.0
    %169 = vmatprep.subr.mxu0 0.0
    %170 = vmatpush2.msra.mxu0 0.0
    %171 = vmatprep.subr.mxu0 0.0
    %172 = vmatpush2.msra.mxu0 0.0
    %173 = vmatprep.mubr.f32.mxu0 0.0
    %174 = vmatmul.mubr.f32.gmra.mxu0 %v82
    %v175 = vpop.f32.mrf.mxu0
    %v176 = vadd.f32 %v43, %v175
    %v177 = vpop.f32.mrf.mxu0
    %178 = vmatprep.mubr.f32.mxu0 0.0
    %179 = vmatmul.mubr.f32.gmra.mxu0 %v85
    %v180 = vpop.f32.mrf.mxu0
    %v181 = vadd.f32 %v48, %v180
    %v182 = vpop.f32.mrf.mxu0
    %183 = vmatprep.mubr.f32.mxu0 0.0
    %184 = vmatmul.mubr.f32.gmra.mxu0 %v88
    %v185 = vpop.f32.mrf.mxu0
    %v186 = vadd.f32 %v53, %v185
    %v187 = vpop.f32.mrf.mxu0
    %188 = vmatprep.mubr.f32.mxu0 0.0
    %189 = vmatmul.mubr.f32.gmra.mxu0 %v91
    %v190 = vpop.f32.mrf.mxu0
    %v191 = vadd.f32 %v58, %v190
    %v192 = vpop.f32.mrf.mxu0
    %193 = vmatprep.mubr.f32.mxu0 0.0
    %194 = vmatmul.mubr.f32.gmra.mxu0 %v94
    %v195 = vpop.f32.mrf.mxu0
    %v196 = vadd.f32 %v63, %v195
    %v197 = vpop.f32.mrf.mxu0
    %198 = vmatprep.mubr.f32.mxu0 0.0
    %199 = vmatmul.mubr.f32.gmra.mxu0 %v97
    %v200 = vpop.f32.mrf.mxu0
    %v201 = vadd.f32 %v68, %v200
    %v202 = vpop.f32.mrf.mxu0
    %203 = vmatprep.mubr.f32.mxu0 0.0
    %204 = vmatmul.mubr.f32.gmra.mxu0 %v100
    %v205 = vpop.f32.mrf.mxu0
    %v206 = vadd.f32 %v73, %v205
    %v207 = vpop.f32.mrf.mxu0
    %208 = vmatprep.mubr.f32.mxu0 0.0
    %209 = vmatmul.mubr.f32.gmra.mxu0 %v103
    %v210 = vpop.f32.mrf.mxu0
    %v211 = vadd.f32 %v78, %v210
    %v212 = vpop.f32.mrf.mxu0
    %213 = vdwg.mxu0
    %v214 = vxor.u32 %v176, 2147483648
    %v215 = vxor.u32 %v181, 2147483648
    %v216 = vxor.u32 %v186, 2147483648
    %v217 = vxor.u32 %v191, 2147483648
    %v218 = vmul.f32 %v214, 1.442695
    %v219 = vpow.pop %v218
    %v220 = vmul.f32 %v215, 1.442695
    %v221 = vpow.pop %v220
    %v222 = vmul.f32 %v216, 1.442695
    %v223 = vpow.pop %v222
    %v224 = vmul.f32 %v217, 1.442695
    %v225 = vpow.pop %v224
    %v226 = vadd.f32 %v219, 1.0
    %v227 = vadd.f32 %v221, 1.0
    %v228 = vadd.f32 %v223, 1.0
    %v229 = vadd.f32 %v225, 1.0
    %v230 = vrcp.pop %v226
    %v231 = vmul.f32 1.0, %v230
    %v232 = vrcp.pop %v227
    %v233 = vmul.f32 1.0, %v232
    %v234 = vrcp.pop %v228
    %v235 = vmul.f32 1.0, %v234
    %v236 = vrcp.pop %v229
    %v237 = vmul.f32 1.0, %v236
    %v238 = vtanh.pop %v196
    %v239 = vtanh.pop %v201
    %v240 = vtanh.pop %v206
    %v241 = vtanh.pop %v211
    %v242 = vsub.f32 1.0, %v231
    %v243 = vsub.f32 1.0, %v233
    %v244 = vsub.f32 1.0, %v235
    %v245 = vsub.f32 1.0, %v237
    %v246 = vmul.f32 %v242, %v238
    %v247 = vmul.f32 %v243, %v239
    %v248 = vmul.f32 %v244, %v240
    %v249 = vmul.f32 %v245, %v241
    %v250 = vmax.f32 %v246, 0.0
    %v251 = vmax.f32 %v247, 0.0
    %v252 = vmax.f32 %v248, 0.0
    %v253 = vmax.f32 %v249, 0.0
    %v254 = vld [vmem:[%s3] sm:$0xff]
    %v255 = vld [vmem:[%s3 + $0x8] sm:$0xff]
    %v256 = vld [vmem:[%s3 + $0x10] sm:$0xff]
    %v257 = vld [vmem:[%s3 + $0x18] sm:$0xff]
    %259 = vset.pattern.permute.xlu0 0
    %260 = vperm.xlu0 %259, %v254
    %v261 = vpop.permute.xlu0 %260
    %264 = vset.pattern.permute.xlu0 0
    %265 = vperm.xlu0 %264, %v255
    %v266 = vpop.permute.xlu0 %265
    %269 = vset.pattern.permute.xlu0 0
    %270 = vperm.xlu0 %269, %v256
    %v271 = vpop.permute.xlu0 %270
    %274 = vset.pattern.permute.xlu0 0
    %275 = vperm.xlu0 %274, %v257
    %v276 = vpop.permute.xlu0 %275
    %v278 = vmul.f32 %v250, %v261
    %v279 = vmul.f32 %v251, %v266
    %v280 = vmul.f32 %v252, %v271
    %v281 = vmul.f32 %v253, %v276
    %v282 = vadd.f32 %v278, %v279
    %v283 = vadd.f32 %v282, %v280
    %v284 = vadd.f32 %v283, %v281
    %v285 = vrot.slane %v284, 4
    %v286 = vadd.f32 %v284, %v285
    %v287 = vrot.slane %v286, 2
    %v288 = vadd.f32 %v286, %v287
    %v289 = vrot.slane %v288, 1
    %v290 = vadd.f32 %v288, %v289
    %v291 = vld [vmem:[#allocation2] sm:$0x1]
    %293 = vset.pattern.permute.xlu0 0
    %294 = vperm.xlu0 %293, %v291
    %v295 = vpop.permute.xlu0 %294
    %v297 = vlaneseq
    %v298 = vshrl.u32 %v297, 7
    %v299 = vsub.s32 0, %v298
    %v300 = vrot.slane %v295, %v299
    %v301 = vadd.f32 %v290, %v300
    %302 = vst [vmem:[#allocation3] sm:$0x1] %v301
    // Predicated region
    $region22: #{tpu_custom_call.1} parent=1 // pred_check
      _
    $region23: #{tpu_custom_call.1} parent=1 // pred_check_branch
      %304 = sbr.rel (0) target = $region25
    $region24: #{tpu_custom_call.1} parent=1 // pred_region
      %s306 = ssub.s32 16, 16
      %307 = vsyncadd [#allocation4], %s306
      %s309 = sshll.u32 [#allocation3], 4
      %s310 = int_to_ptr.vmem [resolvable:$true] %s309
      %312 = dma.vmem_to_hbm [thread:$0]  %s310, 16, %s5, [#allocation4]
    $region25: #{tpu_custom_call.1} parent=1 // pred_fallthru
      _
    // Predicated region
    $region26: #{tpu_custom_call.1} parent=1 // pred_check
      _
    $region27: #{tpu_custom_call.1} parent=1 // pred_check_branch
      %314 = sbr.rel (0) target = $region29
    $region28: #{tpu_custom_call.1} parent=1 // pred_region
      %315 = dma.done [#allocation4], 16
    $region29: #{tpu_custom_call.1} parent=1 // pred_fallthru
      _
    %316 = vsyncpa [#allocation4], 1

</llo_original>
